<compile_context>
chip_gen: v5e
topology: v5e:2x2
jax: 0.10.0
libtpu: 0.0.40
codegen_flags: <defaults>
</compile_context>

<pallas_src>
import jax
import jax.numpy as jnp
from jax.experimental import pallas as pl
from jax.experimental.pallas import tpu as pltpu


# ------------------------------ Pallas kernel -------------------------------

def _upblock_fused_kernel(x1_ref, x2q_ref, wf_ref, wa_ref, bf_ref, o_ref):
    # x1_ref : (Cin,  ts)        bf16  low-res pixels (shared by all 4 quadrants)
    # x2q_ref: (4, Chalf, ts)    bf16  quadrant-split skip-connection pixels
    # wf_ref : (4*Cout, Cin)     bf16  folded (convT . 1x1) weights, quadrant-stacked
    # wa_ref : (Cout, Chalf)     bf16  1x1-conv weights acting on x2
    # bf_ref : (Cout, 1)         f32   folded bias
    # o_ref  : (4, Cout, ts)     bf16  output pixels, all four quadrants
    u = jnp.dot(wf_ref[...], x1_ref[...], preferred_element_type=jnp.float32)
    wa = wa_ref[...]
    bias = bf_ref[...]
    cout = o_ref.shape[1]
    for k in range(4):                               # static unroll over quadrants
        acc = u[k * cout:(k + 1) * cout, :]
        acc = acc + jnp.dot(wa, x2q_ref[k], preferred_element_type=jnp.float32)
        o_ref[k] = (acc + bias).astype(o_ref.dtype)


# -------------------------------- helpers ------------------------------------

def _vmem_budgets():
    """(double-buffered activation-block budget, vmem_limit_bytes)."""
    try:
        cap = int(pltpu.get_tpu_info().vmem_capacity_bytes)
    except Exception:
        cap = 64 << 20           # conservative (v7x per-TensorCore VMEM)
    cap = max(cap, 32 << 20)
    return cap // 4, cap // 2    # v5e/v6e: 32/64 MiB, v7x: 16/32 MiB


def _pick_spatial_tile(s1, bytes_per_col, budget_bytes, min_tiles=1):
    """Lane tile: multiple of 128 (or the full dim), sized from a VMEM budget."""
    max_ts = max(128, (budget_bytes // max(1, bytes_per_col)) // 128 * 128)
    if min_tiles > 1 and s1 >= min_tiles * 128:
        max_ts = min(max_ts, max(128, (pl.cdiv(s1, min_tiles) // 128) * 128))
    if s1 <= max_ts:
        return s1                # single full-extent block: always layout-legal
    return max_ts                # multiple of 128; ragged tail is masked on store


# -------------------------------- wrapper -----------------------------------

def up_block_forward(x1, x2, params, *, out_dtype=jnp.float32):
    """UpBlock forward.  x1: (N, C_in, H, W) NCHW; x2: (N, C_in//2, 2H, 2W) NCHW."""
    w_up, b_up, w_c1, b_c1 = (
        params["w_up"], params["b_up"], params["w_conv1"], params["b_conv1"]
    )
    N, Cin, H, W = x1.shape
    Chalf = Cin // 2
    Cout = w_c1.shape[0]
    S1 = H * W
    cdt = jnp.bfloat16   # compute dtype for all streamed tensors (f32 accumulation)

    # ---- fold ConvTranspose2d into the 1x1 conv (weight-sized work, in f32) ----
    w1 = w_c1[:, :, 0, 0].astype(jnp.float32)            # (Cout, Cin)
    wa = w1[:, :Chalf]                                    # acts on x2
    wb = w1[:, Chalf:]                                    # acts on up(x1)
    # wf[kh,kw,o,i] = sum_c wb[o,c] * w_up[i,c,kh,kw]; stacked as ((kh*2+kw)*Cout+o, i)
    wf = jnp.einsum("oc,ickl->kloi", wb, w_up.astype(jnp.float32))
    wf = wf.reshape(4 * Cout, Cin)
    bf = (b_c1 + wb @ b_up).astype(jnp.float32).reshape(Cout, 1)
    wa_b = wa.astype(cdt)
    wf_b = wf.astype(cdt)

    # ---- layout glue (bf16 -> half the relayout bytes of the f32 version) ----
    x1_flat = x1.astype(cdt).reshape(N, Cin, S1)          # pure reshape
    x2q = (
        x2.astype(cdt)
        .reshape(N, Chalf, H, 2, W, 2)
        .transpose(3, 5, 0, 1, 2, 4)                      # (kh, kw, n, c, h, w)
        .reshape(4, N, Chalf, S1)
    )
    # TODO(synk): do this quadrant split (and the final merge below) on-chip with
    # strided stores to remove the remaining two HBM relayout passes.

    budget, vmem_limit = _vmem_budgets()
    bytes_per_col = 2 * 2 * (3 * Cin + 4 * Cout)          # bf16, double-buffered
    ts = _pick_spatial_tile(S1, bytes_per_col, budget,
                            min_tiles=2 if N == 1 else 1)
    n_s = pl.cdiv(S1, ts)

    cost = pl.CostEstimate(
        flops=2 * N * S1 * (4 * Cout * Cin + 4 * Cout * Chalf),
        transcendentals=0,
        bytes_accessed=2 * N * S1 * (3 * Cin + 4 * Cout)
        + 2 * (wf.size + wa.size) + 4 * Cout,
    )

    yq = pl.pallas_call(
        _upblock_fused_kernel,
        out_shape=jax.ShapeDtypeStruct((4, N, Cout, S1), cdt),
        grid_spec=pltpu.PrefetchScalarGridSpec(
            num_scalar_prefetch=0,
            grid=(N, n_s),
            in_specs=[
                pl.BlockSpec((None, Cin, ts),      lambda n, s: (n, 0, s)),
                pl.BlockSpec((4, None, Chalf, ts), lambda n, s: (0, n, 0, s)),
                pl.BlockSpec((4 * Cout, Cin),      lambda n, s: (0, 0)),
                pl.BlockSpec((Cout, Chalf),        lambda n, s: (0, 0)),
                pl.BlockSpec((Cout, 1),            lambda n, s: (0, 0)),
            ],
            out_specs=pl.BlockSpec((4, None, Cout, ts), lambda n, s: (0, n, 0, s)),
        ),
        compiler_params=pltpu.CompilerParams(
            dimension_semantics=("parallel", "parallel"),
            vmem_limit_bytes=int(vmem_limit),
        ),
        cost_estimate=cost,
    )(x1_flat, x2q, wf_b, wa_b, bf)

    # quadrant merge back to NCHW: y[n,o,2h+kh,2w+kw] = yq[2*kh+kw, n, o, h*W+w]
    y = (
        yq.reshape(2, 2, N, Cout, H, W)
        .transpose(2, 3, 4, 0, 5, 1)
        .reshape(N, Cout, 2 * H, 2 * W)
        .astype(out_dtype)
    )
    return y


# ------------------------------- reference ----------------------------------

def up_block_reference(x1, x2, params):
    """Pure-JAX (non-Pallas, f32) reference mirroring PyTorch semantics."""
    w_up, b_up, w_c1, b_c1 = (
        params["w_up"], params["b_up"], params["w_conv1"], params["b_conv1"]
    )
    N, Cin, H, W = x1.shape
    Chalf = Cin // 2
    # ConvTranspose2d k=2 s=2: out[n,o,2h+kh,2w+kw] = sum_i x[n,i,h,w]*W[i,o,kh,kw]+b[o]
    t = jnp.einsum("nihw,iokl->nohwkl", x1, w_up)           # (N, Chalf, H, W, 2, 2)
    t = t.transpose(0, 1, 2, 4, 3, 5).reshape(N, Chalf, 2 * H, 2 * W)
    x1_up = t + b_up[None, :, None, None]
    cat = jnp.concatenate([x2, x1_up], axis=1)              # (N, Cin, 2H, 2W)
    y = jnp.einsum("nchw,oc->nohw", cat, w_c1[:, :, 0, 0]) + b_c1[None, :, None, None]
    return y


# ---------------------------------- main -------------------------------------

if __name__ == "__main__":
    # Small UpBlock shapes consistent with FDUNet's decoder (e.g. up4 scaled down):
    # in_channels=32, out_channels=8, N=2, H=W=8  -> x2 is (2, 16, 16, 16).
    N, Cin, Cout, H, W = 2, 32, 8, 8, 8
    Chalf = Cin // 2

    key = jax.random.PRNGKey(0)
    k1, k2, k3, k4, k5, k6 = jax.random.split(key, 6)

    x1 = jax.random.normal(k1, (N, Cin, H, W), dtype=jnp.float32)
    x2 = jax.random.normal(k2, (N, Chalf, 2 * H, 2 * W), dtype=jnp.float32)

    params = {
        # ConvTranspose2d(in, in//2, k=2, s=2): weight (in, in//2, 2, 2), bias (in//2,)
        "w_up": 0.1 * jax.random.normal(k3, (Cin, Chalf, 2, 2), dtype=jnp.float32),
        "b_up": 0.1 * jax.random.normal(k4, (Chalf,), dtype=jnp.float32),
        # Conv2d(in, out, k=1): weight (out, in, 1, 1), bias (out,)
        "w_conv1": 0.1 * jax.random.normal(k5, (Cout, Cin, 1, 1), dtype=jnp.float32),
        "b_conv1": 0.1 * jax.random.normal(k6, (Cout,), dtype=jnp.float32),
    }

    fwd = jax.jit(up_block_forward)
    y = jax.block_until_ready(fwd(x1, x2, params))

    y_ref = up_block_reference(x1, x2, params)
    assert y.shape == (N, Cout, 2 * H, 2 * W), y.shape
    max_err = float(jnp.max(jnp.abs(y - y_ref)))
    # bf16 streamed path (f32 accumulation): loosened tolerance vs the f32 reference.
    assert jnp.allclose(y, y_ref, atol=5e-2, rtol=5e-2), max_err

    print("KERNEL_OK")
</pallas_src>

<mosaic_0001>
module attributes {stable_mosaic.version = 11 : i64} {
  func.func @_upblock_fused_kernel(%arg0: i32, %arg1: i32, %arg2: memref<1x32x64xbf16, #tpu.memory_space<vmem>>, %arg3: memref<4x1x16x64xbf16, #tpu.memory_space<vmem>>, %arg4: memref<32x32xbf16, #tpu.memory_space<vmem>>, %arg5: memref<8x16xbf16, #tpu.memory_space<vmem>>, %arg6: memref<8x1xf32, #tpu.memory_space<vmem>>, %arg7: memref<4x1x8x64xbf16, #tpu.memory_space<vmem>>) attributes {dimension_semantics = [#tpu.dimension_semantics<parallel>, #tpu.dimension_semantics<parallel>], iteration_bounds = array<i64: 2, 1>, scalar_prefetch = 0 : i64, scratch_operands = 0 : i64, tpu.core_type = #tpu.core_type<tc>, window_params = [{transform_indices = @transform_0, window_bounds = array<i64: 1, 32, 64>}, {transform_indices = @transform_1, window_bounds = array<i64: 4, 1, 16, 64>}, {pipeline_mode = #tpu.pipeline_mode<synchronous>, transform_indices = @transform_2, window_bounds = array<i64: 32, 32>}, {pipeline_mode = #tpu.pipeline_mode<synchronous>, transform_indices = @transform_3, window_bounds = array<i64: 8, 16>}, {pipeline_mode = #tpu.pipeline_mode<synchronous>, transform_indices = @transform_4, window_bounds = array<i64: 8, 1>}, {transform_indices = @transform_5, window_bounds = array<i64: 4, 1, 8, 64>}]} {
    %c0 = arith.constant 0 : index
    %c0_0 = arith.constant 0 : index
    %0 = vector.load %arg4[%c0, %c0_0] : memref<32x32xbf16, #tpu.memory_space<vmem>>, vector<32x32xbf16>
    %c0_1 = arith.constant 0 : index
    %c0_2 = arith.constant 0 : index
    %c0_3 = arith.constant 0 : index
    %1 = vector.load %arg2[%c0_1, %c0_2, %c0_3] : memref<1x32x64xbf16, #tpu.memory_space<vmem>>, vector<1x32x64xbf16>
    %2 = vector.shape_cast %1 : vector<1x32x64xbf16> to vector<32x64xbf16>
    %cst = arith.constant dense<0.000000e+00> : vector<32x64xf32>
    %3 = tpu.matmul %0, %2, %cst {dimension_numbers = #tpu.dot_dimension_numbers<[1], [0], [0], [1], [0, 0, 1, 1], [], []>} : vector<32x32xbf16>, vector<32x64xbf16>, vector<32x64xf32> -> vector<32x64xf32>
    %c0_4 = arith.constant 0 : index
    %c0_5 = arith.constant 0 : index
    %4 = vector.load %arg5[%c0_4, %c0_5] : memref<8x16xbf16, #tpu.memory_space<vmem>>, vector<8x16xbf16>
    %c0_6 = arith.constant 0 : index
    %c0_7 = arith.constant 0 : index
    %5 = vector.load %arg6[%c0_6, %c0_7] : memref<8x1xf32, #tpu.memory_space<vmem>>, vector<8x1xf32>
    %6 = vector.extract_strided_slice %3 {offsets = [0, 0], sizes = [8, 64], strides = [1, 1]} : vector<32x64xf32> to vector<8x64xf32>
    %c0_8 = arith.constant 0 : index
    %c0_9 = arith.constant 0 : index
    %c0_10 = arith.constant 0 : index
    %c0_11 = arith.constant 0 : index
    %7 = vector.load %arg3[%c0_8, %c0_9, %c0_10, %c0_11] : memref<4x1x16x64xbf16, #tpu.memory_space<vmem>>, vector<1x1x16x64xbf16>
    %8 = vector.shape_cast %7 : vector<1x1x16x64xbf16> to vector<16x64xbf16>
    %cst_12 = arith.constant dense<0.000000e+00> : vector<8x64xf32>
    %9 = tpu.matmul %4, %8, %cst_12 {dimension_numbers = #tpu.dot_dimension_numbers<[1], [0], [0], [1], [0, 0, 1, 1], [], []>} : vector<8x16xbf16>, vector<16x64xbf16>, vector<8x64xf32> -> vector<8x64xf32>
    %10 = arith.addf %6, %9 : vector<8x64xf32>
    %11 = vector.broadcast %5 : vector<8x1xf32> to vector<8x64xf32>
    %12 = arith.addf %10, %11 : vector<8x64xf32>
    %13 = arith.truncf %12 : vector<8x64xf32> to vector<8x64xbf16>
    %c0_13 = arith.constant 0 : index
    %c0_14 = arith.constant 0 : index
    %c0_15 = arith.constant 0 : index
    %c0_16 = arith.constant 0 : index
    %14 = vector.load %arg7[%c0_13, %c0_14, %c0_15, %c0_16] : memref<4x1x8x64xbf16, #tpu.memory_space<vmem>>, vector<1x1x8x64xbf16>
    %15 = vector.shape_cast %14 : vector<1x1x8x64xbf16> to vector<8x64xbf16>
    %16 = vector.shape_cast %13 : vector<8x64xbf16> to vector<1x1x8x64xbf16>
    tpu.vector_store %arg7[%c0_13, %c0_14, %c0_15, %c0_16], %16 {strides = array<i32>} : memref<4x1x8x64xbf16, #tpu.memory_space<vmem>>, vector<1x1x8x64xbf16>,
    %17 = vector.extract_strided_slice %3 {offsets = [8, 0], sizes = [8, 64], strides = [1, 1]} : vector<32x64xf32> to vector<8x64xf32>
    %c1 = arith.constant 1 : index
    %c0_17 = arith.constant 0 : index
    %c0_18 = arith.constant 0 : index
    %c0_19 = arith.constant 0 : index
    %18 = vector.load %arg3[%c1, %c0_17, %c0_18, %c0_19] : memref<4x1x16x64xbf16, #tpu.memory_space<vmem>>, vector<1x1x16x64xbf16>
    %19 = vector.shape_cast %18 : vector<1x1x16x64xbf16> to vector<16x64xbf16>
    %cst_20 = arith.constant dense<0.000000e+00> : vector<8x64xf32>
    %20 = tpu.matmul %4, %19, %cst_20 {dimension_numbers = #tpu.dot_dimension_numbers<[1], [0], [0], [1], [0, 0, 1, 1], [], []>} : vector<8x16xbf16>, vector<16x64xbf16>, vector<8x64xf32> -> vector<8x64xf32>
    %21 = arith.addf %17, %20 : vector<8x64xf32>
    %22 = vector.broadcast %5 : vector<8x1xf32> to vector<8x64xf32>
    %23 = arith.addf %21, %22 : vector<8x64xf32>
    %24 = arith.truncf %23 : vector<8x64xf32> to vector<8x64xbf16>
    %c1_21 = arith.constant 1 : index
    %c0_22 = arith.constant 0 : index
    %c0_23 = arith.constant 0 : index
    %c0_24 = arith.constant 0 : index
    %25 = vector.load %arg7[%c1_21, %c0_22, %c0_23, %c0_24] : memref<4x1x8x64xbf16, #tpu.memory_space<vmem>>, vector<1x1x8x64xbf16>
    %26 = vector.shape_cast %25 : vector<1x1x8x64xbf16> to vector<8x64xbf16>
    %27 = vector.shape_cast %24 : vector<8x64xbf16> to vector<1x1x8x64xbf16>
    tpu.vector_store %arg7[%c1_21, %c0_22, %c0_23, %c0_24], %27 {strides = array<i32>} : memref<4x1x8x64xbf16, #tpu.memory_space<vmem>>, vector<1x1x8x64xbf16>,
    %28 = vector.extract_strided_slice %3 {offsets = [16, 0], sizes = [8, 64], strides = [1, 1]} : vector<32x64xf32> to vector<8x64xf32>
    %c2 = arith.constant 2 : index
    %c0_25 = arith.constant 0 : index
    %c0_26 = arith.constant 0 : index
    %c0_27 = arith.constant 0 : index
    %29 = vector.load %arg3[%c2, %c0_25, %c0_26, %c0_27] : memref<4x1x16x64xbf16, #tpu.memory_space<vmem>>, vector<1x1x16x64xbf16>
    %30 = vector.shape_cast %29 : vector<1x1x16x64xbf16> to vector<16x64xbf16>
    %cst_28 = arith.constant dense<0.000000e+00> : vector<8x64xf32>
    %31 = tpu.matmul %4, %30, %cst_28 {dimension_numbers = #tpu.dot_dimension_numbers<[1], [0], [0], [1], [0, 0, 1, 1], [], []>} : vector<8x16xbf16>, vector<16x64xbf16>, vector<8x64xf32> -> vector<8x64xf32>
    %32 = arith.addf %28, %31 : vector<8x64xf32>
    %33 = vector.broadcast %5 : vector<8x1xf32> to vector<8x64xf32>
    %34 = arith.addf %32, %33 : vector<8x64xf32>
    %35 = arith.truncf %34 : vector<8x64xf32> to vector<8x64xbf16>
    %c2_29 = arith.constant 2 : index
    %c0_30 = arith.constant 0 : index
    %c0_31 = arith.constant 0 : index
    %c0_32 = arith.constant 0 : index
    %36 = vector.load %arg7[%c2_29, %c0_30, %c0_31, %c0_32] : memref<4x1x8x64xbf16, #tpu.memory_space<vmem>>, vector<1x1x8x64xbf16>
    %37 = vector.shape_cast %36 : vector<1x1x8x64xbf16> to vector<8x64xbf16>
    %38 = vector.shape_cast %35 : vector<8x64xbf16> to vector<1x1x8x64xbf16>
    tpu.vector_store %arg7[%c2_29, %c0_30, %c0_31, %c0_32], %38 {strides = array<i32>} : memref<4x1x8x64xbf16, #tpu.memory_space<vmem>>, vector<1x1x8x64xbf16>,
    %39 = vector.extract_strided_slice %3 {offsets = [24, 0], sizes = [8, 64], strides = [1, 1]} : vector<32x64xf32> to vector<8x64xf32>
    %c3 = arith.constant 3 : index
    %c0_33 = arith.constant 0 : index
    %c0_34 = arith.constant 0 : index
    %c0_35 = arith.constant 0 : index
    %40 = vector.load %arg3[%c3, %c0_33, %c0_34, %c0_35] : memref<4x1x16x64xbf16, #tpu.memory_space<vmem>>, vector<1x1x16x64xbf16>
    %41 = vector.shape_cast %40 : vector<1x1x16x64xbf16> to vector<16x64xbf16>
    %cst_36 = arith.constant dense<0.000000e+00> : vector<8x64xf32>
    %42 = tpu.matmul %4, %41, %cst_36 {dimension_numbers = #tpu.dot_dimension_numbers<[1], [0], [0], [1], [0, 0, 1, 1], [], []>} : vector<8x16xbf16>, vector<16x64xbf16>, vector<8x64xf32> -> vector<8x64xf32>
    %43 = arith.addf %39, %42 : vector<8x64xf32>
    %44 = vector.broadcast %5 : vector<8x1xf32> to vector<8x64xf32>
    %45 = arith.addf %43, %44 : vector<8x64xf32>
    %46 = arith.truncf %45 : vector<8x64xf32> to vector<8x64xbf16>
    %c3_37 = arith.constant 3 : index
    %c0_38 = arith.constant 0 : index
    %c0_39 = arith.constant 0 : index
    %c0_40 = arith.constant 0 : index
    %47 = vector.load %arg7[%c3_37, %c0_38, %c0_39, %c0_40] : memref<4x1x8x64xbf16, #tpu.memory_space<vmem>>, vector<1x1x8x64xbf16>
    %48 = vector.shape_cast %47 : vector<1x1x8x64xbf16> to vector<8x64xbf16>
    %49 = vector.shape_cast %46 : vector<8x64xbf16> to vector<1x1x8x64xbf16>
    tpu.vector_store %arg7[%c3_37, %c0_38, %c0_39, %c0_40], %49 {strides = array<i32>} : memref<4x1x8x64xbf16, #tpu.memory_space<vmem>>, vector<1x1x8x64xbf16>,
    return
  }
  func.func @transform_0(%arg0: i32, %arg1: i32) -> (i32, i32, i32) {
    %c0_i32 = arith.constant 0 : i32
    %c0_i32_0 = arith.constant 0 : i32
    return %arg0, %c0_i32, %arg1 : i32, i32, i32
  }
  func.func @transform_1(%arg0: i32, %arg1: i32) -> (i32, i32, i32, i32) {
    %c0_i32 = arith.constant 0 : i32
    %c0_i32_0 = arith.constant 0 : i32
    %c0_i32_1 = arith.constant 0 : i32
    return %c0_i32, %arg0, %c0_i32_0, %arg1 : i32, i32, i32, i32
  }
  func.func @transform_2(%arg0: i32, %arg1: i32) -> (i32, i32) {
    %c0_i32 = arith.constant 0 : i32
    %c0_i32_0 = arith.constant 0 : i32
    %c0_i32_1 = arith.constant 0 : i32
    return %c0_i32, %c0_i32_0 : i32, i32
  }
  func.func @transform_3(%arg0: i32, %arg1: i32) -> (i32, i32) {
    %c0_i32 = arith.constant 0 : i32
    %c0_i32_0 = arith.constant 0 : i32
    %c0_i32_1 = arith.constant 0 : i32
    return %c0_i32, %c0_i32_0 : i32, i32
  }
  func.func @transform_4(%arg0: i32, %arg1: i32) -> (i32, i32) {
    %c0_i32 = arith.constant 0 : i32
    %c0_i32_0 = arith.constant 0 : i32
    %c0_i32_1 = arith.constant 0 : i32
    return %c0_i32, %c0_i32_0 : i32, i32
  }
  func.func @transform_5(%arg0: i32, %arg1: i32) -> (i32, i32, i32, i32) {
    %c0_i32 = arith.constant 0 : i32
    %c0_i32_0 = arith.constant 0 : i32
    %c0_i32_1 = arith.constant 0 : i32
    return %c0_i32, %arg0, %c0_i32_0, %arg1 : i32, i32, i32, i32
  }
}

</mosaic_0001>

<llo_original>
// kernel: up_block_forward.1
$region0: #{up_block_forward.1}
  #allocation0 [shape = 'u32[]', space=smem, size = 0x4, offset = 0x4, fixed_abs, tag = 'smem constant byte address 0x4 - core index']
  #allocation1 [shape = 'u32[72,128]{1,0:T(1,128)}', space=vmem, size = 0x9000, scoped, tag = 'internal scratch']
  %s0 = inlined_call_operand.vmem [shape: bf16[2,32,64], index: 0, kind: input, shape index: {}]
  %s1 = inlined_call_operand.vmem [shape: bf16[4,2,16,64], index: 1, kind: input, shape index: {}]
  %s2 = inlined_call_operand.vmem [shape: bf16[32,32], index: 2, kind: input, shape index: {}]
  %s3 = inlined_call_operand.vmem [shape: bf16[8,16], index: 3, kind: input, shape index: {}]
  %s4 = inlined_call_operand.vmem [shape: f32[8,1], index: 4, kind: input, shape index: {}]
  %s5 = inlined_call_operand.vmem [shape: bf16[4,2,8,64], index: 5, kind: output, shape index: {}]
  %s6 = sld [smem:[#allocation0]]
  $region131: #{up_block_forward.1} parent=0
    _
  %s8 = ssub.s32 1, %s6
  %s9 = scalar_select 0, %s8, %s6
  $region1: #{up_block_forward.1} parent=0
    #allocation2 [shape = 'u8[32768]{0}', space=vmem, size = 0x8000, scoped, tag = 'input window, operand 1']
    #allocation3 [shape = 'u8[16384]{0}', space=vmem, size = 0x4000, scoped, tag = 'output window, operand 0']
    loop: start=0, step=1, limit=4
    $region2: #{up_block_forward.1} parent=1 // loop_pre_header
      _
    $region3: #{up_block_forward.1} parent=1 // loop_header
      %s11 = sphi 0, %s15
      %p12 = scmp.ge.s32.totalorder %s11, 4
      %s18 = sphi 0, %s30
      %s19 = sphi 0, %s26
      %s20 = sphi 0, %s18
      %s21 = sphi 0, %s19
      %s22 = sphi 0, %s20
      %s23 = sphi 0, %s21
      %s35 = sphi 0, %s37
      %s38 = sphi 0, %s35
      %s39 = sphi 0, %s38
      %s55 = sphi 0, %s39
      %s63 = sphi 0, %s65
      %s66 = sphi 0, %s63
      %s67 = sphi 0, %s66
      %s83 = sphi 0, %s67
      %s87 = sphi 0, %s87
      %s89 = sphi 0, %s87
      %s90 = sphi 0, %s89
      %s104 = sphi 0, %s90
      %s108 = sphi 0, %s108
      %s110 = sphi 0, %s108
      %s111 = sphi 0, %s110
      %s125 = sphi 0, %s111
      %s129 = sphi 0, %s129
      %s131 = sphi 0, %s129
      %s132 = sphi 0, %s131
      %s146 = sphi 0, %s132
      %s154 = sphi 0, %s156
      %s157 = sphi 0, %s154
      %s158 = sphi 0, %s157
      %s174 = sphi 0, %s158
    $region4: #{up_block_forward.1} parent=1 // loop_header_branch
      %14 = sbr.rel (%p12) target = $region8
    $region5: #{up_block_forward.1} parent=1 // loop_body
      %s16 = ssub.s32 %s11, 1
      %s17 = ssub.s32 %s11, 2
      %s24 = sadd.s32 1, %s19
      %p25 = scmp.ge.s32.totalorder %s24, 1
      %s26 = scalar_select %p25, 0, %s24
      %s27 = sadd.s32 1, %s18
      %s28 = scalar_select %p25, %s27, %s18
      %p29 = scmp.ge.s32.totalorder %s28, 2
      %s30 = scalar_select %p29, 0, %s28
      %s31 = ssub.s32 %s18, %s30
      %s32 = ssub.s32 %s19, %s26
      %s33 = sor.u32 %s31, %s32
      %p34 = scmp.eq.s32.totalorder %s33, 0
      %s36 = sadd.s32 %s35, 1
      %s37 = scalar_select %p34, %s35, %s36
      %p40 = pneg %p34
      %p41 = scmp.eq.s32.totalorder %s11, 1
      %p42 = por %p40, %p41
      %p43 = scmp.ne.s32.totalorder %s35, %s38
      %p44 = scmp.eq.s32.totalorder %s11, 0
      %p45 = por %p43, %p44
      %p46 = scmp.ne.s32.totalorder %s35, %s38
      %p47 = scmp.eq.s32.totalorder %s16, 1
      %p48 = por %p46, %p47
      %p49 = scmp.ne.s32.totalorder %s38, %s39
      %p50 = scmp.eq.s32.totalorder %s16, 0
      %p51 = por %p49, %p50
      %p52 = scmp.ne.s32.totalorder %s38, %s39
      %p53 = scmp.eq.s32.totalorder %s17, 1
      %p54 = por %p52, %p53
      %p56 = scmp.ne.s32.totalorder %s39, %s55
      %p57 = scmp.eq.s32.totalorder %s17, 0
      %p58 = por %p56, %p57
      %s59 = ssub.s32 %s18, %s30
      %s60 = ssub.s32 %s19, %s26
      %s61 = sor.u32 %s59, %s60
      %p62 = scmp.eq.s32.totalorder %s61, 0
      %s64 = sadd.s32 %s63, 1
      %s65 = scalar_select %p62, %s63, %s64
      %p68 = pneg %p62
      %p69 = scmp.eq.s32.totalorder %s11, 1
      %p70 = por %p68, %p69
      %p71 = scmp.ne.s32.totalorder %s63, %s66
      %p72 = scmp.eq.s32.totalorder %s11, 0
      %p73 = por %p71, %p72
      %p74 = scmp.ne.s32.totalorder %s63, %s66
      %p75 = scmp.eq.s32.totalorder %s16, 1
      %p76 = por %p74, %p75
      %p77 = scmp.ne.s32.totalorder %s66, %s67
      %p78 = scmp.eq.s32.totalorder %s16, 0
      %p79 = por %p77, %p78
      %p80 = scmp.ne.s32.totalorder %s66, %s67
      %p81 = scmp.eq.s32.totalorder %s17, 1
      %p82 = por %p80, %p81
      %p84 = scmp.ne.s32.totalorder %s67, %s83
      %p85 = scmp.eq.s32.totalorder %s17, 0
      %p86 = por %p84, %p85
      %s88 = sadd.s32 %s87, 1
      %p91 = scmp.eq.s32.totalorder %s11, 1
      %p92 = scmp.ne.s32.totalorder %s87, %s89
      %p93 = scmp.eq.s32.totalorder %s11, 0
      %p94 = por %p92, %p93
      %p95 = scmp.ne.s32.totalorder %s87, %s89
      %p96 = scmp.eq.s32.totalorder %s16, 1
      %p97 = por %p95, %p96
      %p98 = scmp.ne.s32.totalorder %s89, %s90
      %p99 = scmp.eq.s32.totalorder %s16, 0
      %p100 = por %p98, %p99
      %p101 = scmp.ne.s32.totalorder %s89, %s90
      %p102 = scmp.eq.s32.totalorder %s17, 1
      %p103 = por %p101, %p102
      %p105 = scmp.ne.s32.totalorder %s90, %s104
      %p106 = scmp.eq.s32.totalorder %s17, 0
      %p107 = por %p105, %p106
      %s109 = sadd.s32 %s108, 1
      %p112 = scmp.eq.s32.totalorder %s11, 1
      %p113 = scmp.ne.s32.totalorder %s108, %s110
      %p114 = scmp.eq.s32.totalorder %s11, 0
      %p115 = por %p113, %p114
      %p116 = scmp.ne.s32.totalorder %s108, %s110
      %p117 = scmp.eq.s32.totalorder %s16, 1
      %p118 = por %p116, %p117
      %p119 = scmp.ne.s32.totalorder %s110, %s111
      %p120 = scmp.eq.s32.totalorder %s16, 0
      %p121 = por %p119, %p120
      %p122 = scmp.ne.s32.totalorder %s110, %s111
      %p123 = scmp.eq.s32.totalorder %s17, 1
      %p124 = por %p122, %p123
      %p126 = scmp.ne.s32.totalorder %s111, %s125
      %p127 = scmp.eq.s32.totalorder %s17, 0
      %p128 = por %p126, %p127
      %s130 = sadd.s32 %s129, 1
      %p133 = scmp.eq.s32.totalorder %s11, 1
      %p134 = scmp.ne.s32.totalorder %s129, %s131
      %p135 = scmp.eq.s32.totalorder %s11, 0
      %p136 = por %p134, %p135
      %p137 = scmp.ne.s32.totalorder %s129, %s131
      %p138 = scmp.eq.s32.totalorder %s16, 1
      %p139 = por %p137, %p138
      %p140 = scmp.ne.s32.totalorder %s131, %s132
      %p141 = scmp.eq.s32.totalorder %s16, 0
      %p142 = por %p140, %p141
      %p143 = scmp.ne.s32.totalorder %s131, %s132
      %p144 = scmp.eq.s32.totalorder %s17, 1
      %p145 = por %p143, %p144
      %p147 = scmp.ne.s32.totalorder %s132, %s146
      %p148 = scmp.eq.s32.totalorder %s17, 0
      %p149 = por %p147, %p148
      %s150 = ssub.s32 %s18, %s30
      %s151 = ssub.s32 %s19, %s26
      %s152 = sor.u32 %s150, %s151
      %p153 = scmp.eq.s32.totalorder %s152, 0
      %s155 = sadd.s32 %s154, 1
      %s156 = scalar_select %p153, %s154, %s155
      %p159 = pneg %p153
      %p160 = scmp.eq.s32.totalorder %s11, 1
      %p161 = por %p159, %p160
      %p162 = scmp.ne.s32.totalorder %s154, %s157
      %p163 = scmp.eq.s32.totalorder %s11, 0
      %p164 = por %p162, %p163
      %p165 = scmp.ne.s32.totalorder %s154, %s157
      %p166 = scmp.eq.s32.totalorder %s16, 1
      %p167 = por %p165, %p166
      %p168 = scmp.ne.s32.totalorder %s157, %s158
      %p169 = scmp.eq.s32.totalorder %s16, 0
      %p170 = por %p168, %p169
      %p171 = scmp.ne.s32.totalorder %s157, %s158
      %p172 = scmp.eq.s32.totalorder %s17, 1
      %p173 = por %p171, %p172
      %p175 = scmp.ne.s32.totalorder %s158, %s174
      %p176 = scmp.eq.s32.totalorder %s17, 0
      %p177 = por %p175, %p176
      %p178 = scmp.le.s32.totalorder 1, %s11
      %p179 = scmp.lt.s32.totalorder %s11, 3
      %p180 = pnand %p178, %p179
      %p181 = pneg %p180
      // Predicated region
      $region9: #{up_block_forward.1} parent=5 // pred_check
        _
      $region10: #{up_block_forward.1} parent=5 // pred_check_branch
        %183 = sbr.rel (%p180) target = $region12
      $region11: #{up_block_forward.1} parent=5 // pred_region
        %s184 = ssub.s32 %s11, 1
        // Predicated region
        $region13: #{up_block_forward.1} parent=11 // pred_check
          %p185 = pneg %p100
        $region14: #{up_block_forward.1} parent=11 // pred_check_branch
          %187 = sbr.rel (%p185) target = $region16
        $region15: #{up_block_forward.1} parent=11 // pred_region
          _
        $region16: #{up_block_forward.1} parent=11 // pred_fallthru
          _
        // Predicated region
        $region17: #{up_block_forward.1} parent=11 // pred_check
          %p188 = pneg %p121
        $region18: #{up_block_forward.1} parent=11 // pred_check_branch
          %190 = sbr.rel (%p188) target = $region20
        $region19: #{up_block_forward.1} parent=11 // pred_region
          _
        $region20: #{up_block_forward.1} parent=11 // pred_fallthru
          _
        // Predicated region
        $region21: #{up_block_forward.1} parent=11 // pred_check
          %p191 = pneg %p142
        $region22: #{up_block_forward.1} parent=11 // pred_check_branch
          %193 = sbr.rel (%p191) target = $region24
        $region23: #{up_block_forward.1} parent=11 // pred_region
          _
        $region24: #{up_block_forward.1} parent=11 // pred_fallthru
          _
      $region12: #{up_block_forward.1} parent=5 // pred_fallthru
        _
      %p194 = scmp.lt.s32.totalorder %s11, 2
      // Predicated region
      $region25: #{up_block_forward.1} parent=5 // pred_check
        %p195 = pneg %p194
      $region26: #{up_block_forward.1} parent=5 // pred_check_branch
        %197 = sbr.rel (%p195) target = $region28
      $region27: #{up_block_forward.1} parent=5 // pred_region
        // Predicated region
        $region29: #{up_block_forward.1} parent=27 // pred_check
          %p198 = pneg %p45
        $region30: #{up_block_forward.1} parent=27 // pred_check_branch
          %200 = sbr.rel (%p198) target = $region32
        $region31: #{up_block_forward.1} parent=27 // pred_region
          %p201 = scmp.lt.s32.totalorder %s18, 1
          %s202 = scalar_select %p201, %s18, 1
          %p203 = scmp.lt.s32.totalorder %s19, 0
          %s204 = scalar_select %p203, %s19, 0
          %s205 = smul.addr %s202, 4
          %s206 = sadd.s32 %s204, %s205
          %s207 = smul.addr %s206, 4
          %s208 = scalar_lea.vmem %s0, %s207
        $region32: #{up_block_forward.1} parent=27 // pred_fallthru
          _
        // Predicated region
        $region33: #{up_block_forward.1} parent=27 // pred_check
          %p209 = pneg %p73
        $region34: #{up_block_forward.1} parent=27 // pred_check_branch
          %211 = sbr.rel (%p209) target = $region36
        $region35: #{up_block_forward.1} parent=27 // pred_region
          %s212 = sand.u32 %s63, 1
          %s213 = sand.u32 %s63, 1
          %s214 = smul.addr %s213, 32
          %s215 = scalar_lea.vmem [#allocation2], %s214
          %s216 = smul.addr %s18, 2
          %s217 = sadd.s32 %s19, %s216
          %s218 = smul.addr %s217, 4
          %s219 = scalar_lea.vmem %s1, %s218
          // Predicated region
          $region37: #{up_block_forward.1} parent=35 // pred_check
            _
          $region38: #{up_block_forward.1} parent=35 // pred_check_branch
            %221 = sbr.rel (0) target = $region40
          $region39: #{up_block_forward.1} parent=35 // pred_region
            // Predicated region
            $region41: #{up_block_forward.1} parent=39 // pred_check
              _
            $region42: #{up_block_forward.1} parent=39 // pred_check_branch
              %223 = sbr.rel target = $region44
            $region43: #{up_block_forward.1} parent=39 // pred_region
              // Predicated region
              $region56: #{up_block_forward.1} parent=43 // pred_check
                _
              $region57: #{up_block_forward.1} parent=43 // pred_check_branch
                %253 = sbr.rel (0) target = $region59
              $region58: #{up_block_forward.1} parent=43 // pred_region
                loop: start=0, step=1, limit=1
                $region60: #{up_block_forward.1} parent=58 // loop_pre_header
                  _
                $region61: #{up_block_forward.1} parent=58 // loop_header
                  %s255 = sphi 0, %s259
                  %p256 = scmp.ge.s32.totalorder %s255, 1
                  %s260 = sphi %s219, %s219
                  %s261 = sphi %s215, %s215
                $region62: #{up_block_forward.1} parent=58 // loop_header_branch
                  %258 = sbr.rel (%p256) target = $region66
                $region63: #{up_block_forward.1} parent=58 // loop_body
                  _
                $region64: #{up_block_forward.1} parent=58 // loop_footer
                  %s259 = sadd.s32 1, %s255
                $region65: #{up_block_forward.1} parent=58 // loop_footer_branch
                  %254 = sbr.rel target = $region61
                $region66: #{up_block_forward.1} parent=58 // loop_exit
                  _
                %s263 = ssub.s32 16, 1
                loop: start=0, step=1, limit=1
                $region67: #{up_block_forward.1} parent=58 // loop_pre_header
                  _
                $region68: #{up_block_forward.1} parent=58 // loop_header
                  %s265 = sphi 0, %s269
                  %p266 = scmp.ge.s32.totalorder %s265, 1
                  %s270 = sphi %s219, %s219
                  %s271 = sphi %s215, %s215
                $region69: #{up_block_forward.1} parent=58 // loop_header_branch
                  %268 = sbr.rel (%p266) target = $region73
                $region70: #{up_block_forward.1} parent=58 // loop_body
                  %v272 = vld [vmem:[%s270] sm:%s263]
                  %273 = vst [vmem:[%s271] sm:%s263] %v272
                  %v274 = vld [vmem:[%s270 + $0x4] sm:%s263]
                  %275 = vst [vmem:[%s271 + $0x4] sm:%s263] %v274
                  %v276 = vld [vmem:[%s270 + $0x10] sm:%s263]
                  %277 = vst [vmem:[%s271 + $0x8] sm:%s263] %v276
                  %v278 = vld [vmem:[%s270 + $0x14] sm:%s263]
                  %279 = vst [vmem:[%s271 + $0xc] sm:%s263] %v278
                  %v280 = vld [vmem:[%s270 + $0x20] sm:%s263]
                  %281 = vst [vmem:[%s271 + $0x10] sm:%s263] %v280
                  %v282 = vld [vmem:[%s270 + $0x24] sm:%s263]
                  %283 = vst [vmem:[%s271 + $0x14] sm:%s263] %v282
                  %v284 = vld [vmem:[%s270 + $0x30] sm:%s263]
                  %285 = vst [vmem:[%s271 + $0x18] sm:%s263] %v284
                  %v286 = vld [vmem:[%s270 + $0x34] sm:%s263]
                  %287 = vst [vmem:[%s271 + $0x1c] sm:%s263] %v286
                $region71: #{up_block_forward.1} parent=58 // loop_footer
                  %s269 = sadd.s32 1, %s265
                $region72: #{up_block_forward.1} parent=58 // loop_footer_branch
                  %264 = sbr.rel target = $region68
                $region73: #{up_block_forward.1} parent=58 // loop_exit
                  _
              $region59: #{up_block_forward.1} parent=43 // pred_fallthru
                _
            $region44: #{up_block_forward.1} parent=39 // pred_fallthru
              _
            // Predicated region
            $region45: #{up_block_forward.1} parent=39 // pred_check
              _
            $region46: #{up_block_forward.1} parent=39 // pred_check_branch
              %225 = sbr.rel (0) target = $region48
            $region47: #{up_block_forward.1} parent=39 // pred_region
              %s227 = ssub.s32 16, 1
              loop: start=0, step=1, limit=1
              $region49: #{up_block_forward.1} parent=47 // loop_pre_header
                _
              $region50: #{up_block_forward.1} parent=47 // loop_header
                %s229 = sphi 0, %s233
                %p230 = scmp.ge.s32.totalorder %s229, 1
                %s234 = sphi %s219, %s219
                %s235 = sphi %s215, %s215
              $region51: #{up_block_forward.1} parent=47 // loop_header_branch
                %232 = sbr.rel (%p230) target = $region55
              $region52: #{up_block_forward.1} parent=47 // loop_body
                %v236 = vld [vmem:[%s234] sm:%s227]
                %237 = vst [vmem:[%s235] sm:%s227] %v236
                %v238 = vld [vmem:[%s234 + $0x4] sm:%s227]
                %239 = vst [vmem:[%s235 + $0x4] sm:%s227] %v238
                %v240 = vld [vmem:[%s234 + $0x10] sm:%s227]
                %241 = vst [vmem:[%s235 + $0x8] sm:%s227] %v240
                %v242 = vld [vmem:[%s234 + $0x14] sm:%s227]
                %243 = vst [vmem:[%s235 + $0xc] sm:%s227] %v242
                %v244 = vld [vmem:[%s234 + $0x20] sm:%s227]
                %245 = vst [vmem:[%s235 + $0x10] sm:%s227] %v244
                %v246 = vld [vmem:[%s234 + $0x24] sm:%s227]
                %247 = vst [vmem:[%s235 + $0x14] sm:%s227] %v246
                %v248 = vld [vmem:[%s234 + $0x30] sm:%s227]
                %249 = vst [vmem:[%s235 + $0x18] sm:%s227] %v248
                %v250 = vld [vmem:[%s234 + $0x34] sm:%s227]
                %251 = vst [vmem:[%s235 + $0x1c] sm:%s227] %v250
              $region53: #{up_block_forward.1} parent=47 // loop_footer
                %s233 = sadd.s32 1, %s229
              $region54: #{up_block_forward.1} parent=47 // loop_footer_branch
                %228 = sbr.rel target = $region50
              $region55: #{up_block_forward.1} parent=47 // loop_exit
                _
            $region48: #{up_block_forward.1} parent=39 // pred_fallthru
              _
          $region40: #{up_block_forward.1} parent=35 // pred_fallthru
            _
          %288 = vnop
        $region36: #{up_block_forward.1} parent=27 // pred_fallthru
          _
      $region28: #{up_block_forward.1} parent=5 // pred_fallthru
        _
      %p289 = scmp.le.s32.totalorder 1, %s11
      %p290 = scmp.lt.s32.totalorder %s11, 3
      %p291 = pnand %p289, %p290
      %p292 = pneg %p291
      // Predicated region
      $region74: #{up_block_forward.1} parent=5 // pred_check
        _
      $region75: #{up_block_forward.1} parent=5 // pred_check_branch
        %294 = sbr.rel (%p291) target = $region77
      $region76: #{up_block_forward.1} parent=5 // pred_region
        %s295 = ssub.s32 %s11, 1
        %s296 = sand.u32 %s66, 1
        %s297 = sand.u32 %s66, 1
        %s298 = smul.addr %s297, 32
        %s299 = scalar_lea.vmem [#allocation2], %s298
        // Predicated region
        $region78: #{up_block_forward.1} parent=76 // pred_check
          %p300 = pneg %p79
        $region79: #{up_block_forward.1} parent=76 // pred_check_branch
          %302 = sbr.rel (%p300) target = $region81
        $region80: #{up_block_forward.1} parent=76 // pred_region
          _
        $region81: #{up_block_forward.1} parent=76 // pred_fallthru
          _
        %p303 = scmp.lt.s32.totalorder %s20, 1
        %s304 = scalar_select %p303, %s20, 1
        %p305 = scmp.lt.s32.totalorder %s21, 0
        %s306 = scalar_select %p305, %s21, 0
        %s307 = smul.addr %s304, 4
        %s308 = sadd.s32 %s306, %s307
        %s309 = smul.addr %s308, 4
        %s310 = scalar_lea.vmem %s0, %s309
        %p311 = pneg %p51
        %p312 = pneg %p48
        %s313 = sand.u32 %s66, 1
        %s314 = sand.u32 %s66, 1
        %s315 = smul.addr %s314, 32
        %s316 = scalar_lea.vmem [#allocation2], %s315
        %p317 = pneg %p79
        %p318 = pneg %p76
        %p319 = pneg %p100
        %p320 = pneg %p97
        %p321 = pneg %p121
        %p322 = pneg %p118
        %p323 = pneg %p142
        %p324 = pneg %p139
        %p325 = pneg %p170
        %p326 = pneg %p167
        %s327 = sand.u32 %s157, 1
        %s328 = sand.u32 %s157, 1
        %s329 = smul.addr %s328, 16
        %s330 = scalar_lea.vmem [#allocation3], %s329
        %p331 = scmp.lt.s32.totalorder %s20, 1
        %s332 = scalar_select %p331, %s20, 1
        %p333 = scmp.lt.s32.totalorder %s21, 0
        %s334 = scalar_select %p333, %s21, 0
        %s335 = smul.addr %s332, 4
        %s336 = sadd.s32 %s334, %s335
        %s337 = smul.addr %s336, 4
        %s338 = scalar_lea.vmem %s0, %s337
        %v340 = vld [vmem:[%s2] sm:$0xf]
        %v341 = vld [vmem:[%s2 + $0x4] sm:$0xf]
        %v342 = vld [vmem:[%s2 + $0x8] sm:$0xf]
        %v343 = vld [vmem:[%s2 + $0xc] sm:$0xf]
        %v344 = vld [vmem:[%s338] sm:$0xf]
        %v345 = vld [vmem:[%s338 + $0x4] sm:$0xf]
        %v346 = vld [vmem:[%s338 + $0x8] sm:$0xf]
        %v347 = vld [vmem:[%s338 + $0xc] sm:$0xf]
        %v352 = vunpack.c.l.b16 %v340
        %v353 = vunpack.c.l.b16 %v341
        %v354 = vunpack.c.l.b16 %v342
        %v355 = vunpack.c.l.b16 %v343
        %v356 = vpack.c.b16 %v353, %v352
        %v357 = vpack.c.b16 %v355, %v354
        %v362 = vunpack.c.l.b16 %v344
        %v363 = vunpack.c.l.b16 %v345
        %v364 = vunpack.c.l.b16 %v346
        %v365 = vunpack.c.l.b16 %v347
        %v366 = vpack.c.b16 %v363, %v362
        %v367 = vpack.c.b16 %v365, %v364
        %vm370 = vcmask 261120
        %v372 = vsel %vm370, %v356, 0
        %v375 = vsel %vm370, %v357, 0
        %377 = vmatpush.bf16.msra.mxu0 0
        %378 = vmatpush.bf16.msra.mxu0 0
        %379 = vmatpush.bf16.msra.mxu0 0
        %380 = vmatpush.bf16.msra.mxu0 0
        %381 = vmatpush.bf16.msra.mxu0 0
        %382 = vmatpush.bf16.msra.mxu0 0
        %383 = vmatpush.bf16.msra.mxu0 %v367
        %384 = vmatpush.bf16.msra.mxu0 %v366
        %385 = vmatmul.bf16.gmra.mxu0 %v372
        %v386 = vpop.f32.mrf.mxu0
        %v387 = vadd.f32 0.0, %v386
        %v388 = vpop.f32.mrf.mxu0
        %v389 = vadd.f32 0.0, %v388
        %390 = vmatmul.bf16.gmra.mxu0 %v375
        %v391 = vpop.f32.mrf.mxu0
        %v392 = vadd.f32 0.0, %v391
        %v393 = vpop.f32.mrf.mxu0
        %v394 = vadd.f32 0.0, %v393
        %395 = vdwg.mxu0
        %v396 = vld [vmem:[%s3] sm:$0xf]
        %v397 = vld [vmem:[%s4] sm:$0xff]
        %v398 = vld [vmem:[%s299] sm:$0xf]
        %v399 = vld [vmem:[%s299 + $0x4] sm:$0xf]
        %v402 = vunpack.c.l.b16 %v398
        %v403 = vunpack.c.l.b16 %v399
        %v404 = vpack.c.b16 %v403, %v402
        %vm406 = vcmask 130048
        %v408 = vsel %vm406, %v396, 0
        %410 = vmatpush.bf16.msra.mxu0 0
        %411 = vmatpush.bf16.msra.mxu0 0
        %412 = vmatpush.bf16.msra.mxu0 0
        %413 = vmatpush.bf16.msra.mxu0 0
        %414 = vmatpush.bf16.msra.mxu0 0
        %415 = vmatpush.bf16.msra.mxu0 0
        %416 = vmatpush.bf16.msra.mxu0 0
        %417 = vmatpush.bf16.msra.mxu0 %v404
        %418 = vmatmul.bf16.gmra.mxu0 %v408
        %v419 = vpop.f32.mrf.mxu0
        %v420 = vadd.f32 0.0, %v419
        %v421 = vpop.f32.mrf.mxu0
        %422 = vdwg.mxu0
        %v423 = vadd.f32 %v387, %v420
        %425 = vset.pattern.permute.xlu0 0
        %426 = vperm.xlu0 %425, %v397
        %v427 = vpop.permute.xlu0 %426
        %v429 = vadd.f32 %v423, %v427
        %v430 = vpack.c.bf16 %v429, %v429
        %vm431 = vcmask 519168
        %432 = vst.msk [vmem:[%s330] sm:$0xf] %vm431, %v430
        %s433 = scalar_lea.vmem %s299, 8 [#allocation2]
        %v434 = vld [vmem:[%s433] sm:$0xf]
        %v435 = vld [vmem:[%s433 + $0x4] sm:$0xf]
        %v438 = vunpack.c.l.b16 %v434
        %v439 = vunpack.c.l.b16 %v435
        %v440 = vpack.c.b16 %v439, %v438
        %442 = vmatpush.bf16.msra.mxu0 0
        %443 = vmatpush.bf16.msra.mxu0 0
        %444 = vmatpush.bf16.msra.mxu0 0
        %445 = vmatpush.bf16.msra.mxu0 0
        %446 = vmatpush.bf16.msra.mxu0 0
        %447 = vmatpush.bf16.msra.mxu0 0
        %448 = vmatpush.bf16.msra.mxu0 0
        %449 = vmatpush.bf16.msra.mxu0 %v440
        %450 = vmatmul.bf16.gmra.mxu0 %v408
        %v451 = vpop.f32.mrf.mxu0
        %v452 = vadd.f32 0.0, %v451
        %v453 = vpop.f32.mrf.mxu0
        %454 = vdwg.mxu0
        %v455 = vadd.f32 %v389, %v452
        %v456 = vadd.f32 %v455, %v427
        %v457 = vpack.c.bf16 %v456, %v456
        %s458 = scalar_lea.vmem %s330, 4 [#allocation3]
        %459 = vst.msk [vmem:[%s458] sm:$0xf] %vm431, %v457
        %s460 = scalar_lea.vmem %s299, 16 [#allocation2]
        %v461 = vld [vmem:[%s460] sm:$0xf]
        %v462 = vld [vmem:[%s460 + $0x4] sm:$0xf]
        %v465 = vunpack.c.l.b16 %v461
        %v466 = vunpack.c.l.b16 %v462
        %v467 = vpack.c.b16 %v466, %v465
        %469 = vmatpush.bf16.msra.mxu0 0
        %470 = vmatpush.bf16.msra.mxu0 0
        %471 = vmatpush.bf16.msra.mxu0 0
        %472 = vmatpush.bf16.msra.mxu0 0
        %473 = vmatpush.bf16.msra.mxu0 0
        %474 = vmatpush.bf16.msra.mxu0 0
        %475 = vmatpush.bf16.msra.mxu0 0
        %476 = vmatpush.bf16.msra.mxu0 %v467
        %477 = vmatmul.bf16.gmra.mxu0 %v408
        %v478 = vpop.f32.mrf.mxu0
        %v479 = vadd.f32 0.0, %v478
        %v480 = vpop.f32.mrf.mxu0
        %481 = vdwg.mxu0
        %v482 = vadd.f32 %v392, %v479
        %v483 = vadd.f32 %v482, %v427
        %v484 = vpack.c.bf16 %v483, %v483
        %s485 = scalar_lea.vmem %s330, 8 [#allocation3]
        %486 = vst.msk [vmem:[%s485] sm:$0xf] %vm431, %v484
        %s487 = scalar_lea.vmem %s299, 24 [#allocation2]
        %v488 = vld [vmem:[%s487] sm:$0xf]
        %v489 = vld [vmem:[%s487 + $0x4] sm:$0xf]
        %v492 = vunpack.c.l.b16 %v488
        %v493 = vunpack.c.l.b16 %v489
        %v494 = vpack.c.b16 %v493, %v492
        %496 = vmatpush.bf16.msra.mxu0 0
        %497 = vmatpush.bf16.msra.mxu0 0
        %498 = vmatpush.bf16.msra.mxu0 0
        %499 = vmatpush.bf16.msra.mxu0 0
        %500 = vmatpush.bf16.msra.mxu0 0
        %501 = vmatpush.bf16.msra.mxu0 0
        %502 = vmatpush.bf16.msra.mxu0 0
        %503 = vmatpush.bf16.msra.mxu0 %v494
        %504 = vmatmul.bf16.gmra.mxu0 %v408
        %v505 = vpop.f32.mrf.mxu0
        %v506 = vadd.f32 0.0, %v505
        %v507 = vpop.f32.mrf.mxu0
        %508 = vdwg.mxu0
        %v509 = vadd.f32 %v394, %v506
        %v510 = vadd.f32 %v509, %v427
        %v511 = vpack.c.bf16 %v510, %v510
        %s512 = scalar_lea.vmem %s330, 12 [#allocation3]
        %513 = vst.msk [vmem:[%s512] sm:$0xf] %vm431, %v511
        %s514 = sand.u32 %s157, 1
        %s515 = sand.u32 %s157, 1
        %s516 = smul.addr %s515, 16
        %s517 = scalar_lea.vmem [#allocation3], %s516
        // Predicated region
        $region82: #{up_block_forward.1} parent=76 // pred_check
          %p518 = pneg %p167
        $region83: #{up_block_forward.1} parent=76 // pred_check_branch
          %520 = sbr.rel (%p518) target = $region85
        $region84: #{up_block_forward.1} parent=76 // pred_region
          %s521 = sadd.s32 %s21, %s20
          %s522 = smul.addr %s521, 4
          %s523 = scalar_lea.vmem %s5, %s522
          // Predicated region
          $region86: #{up_block_forward.1} parent=84 // pred_check
            _
          $region87: #{up_block_forward.1} parent=84 // pred_check_branch
            %525 = sbr.rel (0) target = $region89
          $region88: #{up_block_forward.1} parent=84 // pred_region
            // Predicated region
            $region90: #{up_block_forward.1} parent=88 // pred_check
              _
            $region91: #{up_block_forward.1} parent=88 // pred_check_branch
              %527 = sbr.rel target = $region93
            $region92: #{up_block_forward.1} parent=88 // pred_region
              // Predicated region
              $region105: #{up_block_forward.1} parent=92 // pred_check
                _
              $region106: #{up_block_forward.1} parent=92 // pred_check_branch
                %549 = sbr.rel (0) target = $region108
              $region107: #{up_block_forward.1} parent=92 // pred_region
                loop: start=0, step=1, limit=1
                $region109: #{up_block_forward.1} parent=107 // loop_pre_header
                  _
                $region110: #{up_block_forward.1} parent=107 // loop_header
                  %s551 = sphi 0, %s555
                  %p552 = scmp.ge.s32.totalorder %s551, 1
                  %s556 = sphi %s517, %s517
                  %s557 = sphi %s523, %s523
                $region111: #{up_block_forward.1} parent=107 // loop_header_branch
                  %554 = sbr.rel (%p552) target = $region115
                $region112: #{up_block_forward.1} parent=107 // loop_body
                  _
                $region113: #{up_block_forward.1} parent=107 // loop_footer
                  %s555 = sadd.s32 1, %s551
                $region114: #{up_block_forward.1} parent=107 // loop_footer_branch
                  %550 = sbr.rel target = $region110
                $region115: #{up_block_forward.1} parent=107 // loop_exit
                  _
                %s559 = ssub.s32 16, 1
                loop: start=0, step=1, limit=1
                $region116: #{up_block_forward.1} parent=107 // loop_pre_header
                  _
                $region117: #{up_block_forward.1} parent=107 // loop_header
                  %s561 = sphi 0, %s565
                  %p562 = scmp.ge.s32.totalorder %s561, 1
                  %s566 = sphi %s517, %s517
                  %s567 = sphi %s523, %s523
                $region118: #{up_block_forward.1} parent=107 // loop_header_branch
                  %564 = sbr.rel (%p562) target = $region122
                $region119: #{up_block_forward.1} parent=107 // loop_body
                  %v568 = vld [vmem:[%s566] sm:%s559]
                  %569 = vst [vmem:[%s567] sm:%s559] %v568
                  %v570 = vld [vmem:[%s566 + $0x4] sm:%s559]
                  %571 = vst [vmem:[%s567 + $0x8] sm:%s559] %v570
                  %v572 = vld [vmem:[%s566 + $0x8] sm:%s559]
                  %573 = vst [vmem:[%s567 + $0x10] sm:%s559] %v572
                  %v574 = vld [vmem:[%s566 + $0xc] sm:%s559]
                  %575 = vst [vmem:[%s567 + $0x18] sm:%s559] %v574
                $region120: #{up_block_forward.1} parent=107 // loop_footer
                  %s565 = sadd.s32 1, %s561
                $region121: #{up_block_forward.1} parent=107 // loop_footer_branch
                  %560 = sbr.rel target = $region117
                $region122: #{up_block_forward.1} parent=107 // loop_exit
                  _
              $region108: #{up_block_forward.1} parent=92 // pred_fallthru
                _
            $region93: #{up_block_forward.1} parent=88 // pred_fallthru
              _
            // Predicated region
            $region94: #{up_block_forward.1} parent=88 // pred_check
              _
            $region95: #{up_block_forward.1} parent=88 // pred_check_branch
              %529 = sbr.rel (0) target = $region97
            $region96: #{up_block_forward.1} parent=88 // pred_region
              %s531 = ssub.s32 16, 1
              loop: start=0, step=1, limit=1
              $region98: #{up_block_forward.1} parent=96 // loop_pre_header
                _
              $region99: #{up_block_forward.1} parent=96 // loop_header
                %s533 = sphi 0, %s537
                %p534 = scmp.ge.s32.totalorder %s533, 1
                %s538 = sphi %s517, %s517
                %s539 = sphi %s523, %s523
              $region100: #{up_block_forward.1} parent=96 // loop_header_branch
                %536 = sbr.rel (%p534) target = $region104
              $region101: #{up_block_forward.1} parent=96 // loop_body
                %v540 = vld [vmem:[%s538] sm:%s531]
                %541 = vst [vmem:[%s539] sm:%s531] %v540
                %v542 = vld [vmem:[%s538 + $0x4] sm:%s531]
                %543 = vst [vmem:[%s539 + $0x8] sm:%s531] %v542
                %v544 = vld [vmem:[%s538 + $0x8] sm:%s531]
                %545 = vst [vmem:[%s539 + $0x10] sm:%s531] %v544
                %v546 = vld [vmem:[%s538 + $0xc] sm:%s531]
                %547 = vst [vmem:[%s539 + $0x18] sm:%s531] %v546
              $region102: #{up_block_forward.1} parent=96 // loop_footer
                %s537 = sadd.s32 1, %s533
              $region103: #{up_block_forward.1} parent=96 // loop_footer_branch
                %532 = sbr.rel target = $region99
              $region104: #{up_block_forward.1} parent=96 // loop_exit
                _
            $region97: #{up_block_forward.1} parent=88 // pred_fallthru
              _
          $region89: #{up_block_forward.1} parent=84 // pred_fallthru
            _
          %576 = vnop
        $region85: #{up_block_forward.1} parent=76 // pred_fallthru
          _
      $region77: #{up_block_forward.1} parent=5 // pred_fallthru
        _
      %p577 = scmp.le.s32.totalorder 2, %s11
      // Predicated region
      $region123: #{up_block_forward.1} parent=5 // pred_check
        %p578 = pneg %p577
      $region124: #{up_block_forward.1} parent=5 // pred_check_branch
        %580 = sbr.rel (%p578) target = $region126
      $region125: #{up_block_forward.1} parent=5 // pred_region
        %s581 = ssub.s32 %s11, 2
        // Predicated region
        $region127: #{up_block_forward.1} parent=125 // pred_check
          %p582 = pneg %p173
        $region128: #{up_block_forward.1} parent=125 // pred_check_branch
          %584 = sbr.rel (%p582) target = $region130
        $region129: #{up_block_forward.1} parent=125 // pred_region
          %s585 = sand.u32 %s158, 1
          %s586 = sand.u32 %s158, 1
          %s587 = smul.addr %s586, 16
          %s588 = scalar_lea.vmem [#allocation3], %s587
        $region130: #{up_block_forward.1} parent=125 // pred_fallthru
          _
      $region126: #{up_block_forward.1} parent=5 // pred_fallthru
        _
    $region6: #{up_block_forward.1} parent=1 // loop_footer
      %s15 = sadd.s32 1, %s11
    $region7: #{up_block_forward.1} parent=1 // loop_footer_branch
      %10 = sbr.rel target = $region3
    $region8: #{up_block_forward.1} parent=1 // loop_exit
      _

</llo_original>
